<compile_context>
chip_gen: v7x
topology: tpu7x:2x2x1
jax: 0.10.0
libtpu: 0.0.40
codegen_flags: <defaults>
</compile_context>

<pallas_src>
import jax
import jax.numpy as jnp
import numpy as np
from jax.experimental import pallas as pl
from jax.experimental.pallas import tpu as pltpu


def _tpu_vmem_capacity_bytes() -> int:
    """Physical per-core VMEM; conservative (v7x, 64 MiB) fallback if unqueryable."""
    try:
        cap = getattr(pltpu.get_tpu_info(), "vmem_capacity_bytes", None)
        if cap:
            return int(cap)
    except Exception:
        pass
    return 64 * 1024 * 1024


def _aligned_divisors(n: int, mult: int):
    """Divisors of n that are multiples of mult, descending."""
    return [d for d in range(n, 0, -1) if n % d == 0 and d % mult == 0]


def _pick_tiles(S: int, T: int, D: int, itemsize: int, vmem_cap: int):
    """Pick (s_tile, t_tile, d_tile) jointly against a per-generation byte budget."""
    sub = max(8, 32 // itemsize)                 # packed sublane multiple (8/16/32)
    # Resident ~= 2*in_block + out + acc, so keep one input block <= cap/12:
    # ~8 MiB on v5e/v6e (128 MiB VMEM), ~5.3 MiB on v7x (64 MiB VMEM).
    budget = min(8 << 20, max(512 << 10, vmem_cap // 12))

    t_cands = _aligned_divisors(T, sub) or [T]   # full-T is the legal fallback
    d_cands = [D] + [d for d in _aligned_divisors(D, 128) if d != D]
    s_divs = _aligned_divisors(S, sub)           # may be empty (then full S)

    fallback = None
    for d_tile in d_cands:                       # prefer full-D lane-dense blocks
        for t_tile in t_cands:                   # prefer fewest reduction steps
            max_s = budget // (t_tile * d_tile * itemsize)
            if max_s < 1:
                continue
            # Prefer >= 2 grid steps along S (megacore on v7x; near-free elsewhere).
            pref = [d for d in s_divs if d <= min(max_s, S // 2)]
            if pref:
                return pref[0], t_tile, d_tile
            if fallback is None:
                ok = [d for d in s_divs if d <= max_s]
                if ok:
                    fallback = (ok[0], t_tile, d_tile)
                elif S <= max_s:                 # full-S block still within budget
                    fallback = (S, t_tile, d_tile)
    if fallback is not None:
        return fallback
    # Last resort: smallest legal tiles (alignment rules still satisfied); the
    # explicit vmem_limit_bytes below requests the space this actually needs.
    return (s_divs[-1] if s_divs else S), t_cands[-1], d_cands[-1]


def _make_mean_kernel(t_total: int, use_scratch: bool):
    inv_t = 1.0 / float(t_total)

    if use_scratch:
        # Non-f32 inputs: f32 VMEM accumulator, scale + cast at the last step.
        def kernel(x_ref, o_ref, acc_ref):
            k = pl.program_id(2)

            @pl.when(k == 0)
            def _init():
                acc_ref[...] = jnp.zeros_like(acc_ref)

            # Contiguous loads + ONE sublane (XLU) reduce per block.
            acc_ref[...] += jnp.sum(x_ref[...].astype(jnp.float32), axis=1)

            @pl.when(k == pl.num_programs(2) - 1)
            def _finalize():
                o_ref[...] = (acc_ref[...] * jnp.float32(inv_t)).astype(o_ref.dtype)
    else:
        # float32: accumulate directly into the resident output block.
        def kernel(x_ref, o_ref):
            k = pl.program_id(2)

            @pl.when(k == 0)
            def _init():
                o_ref[...] = jnp.zeros_like(o_ref)

            o_ref[...] += jnp.sum(x_ref[...], axis=1)

            @pl.when(k == pl.num_programs(2) - 1)
            def _finalize():
                o_ref[...] = o_ref[...] * jnp.float32(inv_t)

    return kernel


def _sentence_means(x):
    """mean over the token axis via a tiled, pipelined Pallas kernel."""
    S, T, D = x.shape
    itemsize = jnp.dtype(x.dtype).itemsize
    vmem_cap = _tpu_vmem_capacity_bytes()

    s_tile, t_tile, d_tile = _pick_tiles(S, T, D, itemsize, vmem_cap)
    grid = (S // s_tile, D // d_tile, T // t_tile)

    use_scratch = jnp.dtype(x.dtype) != jnp.dtype(jnp.float32)
    scratch = [pltpu.VMEM((s_tile, d_tile), jnp.float32)] if use_scratch else []

    # Explicit scoped-VMEM request derived from the actual footprint
    # (double-buffered input + output + accumulator), clamped below physical.
    in_block = s_tile * t_tile * d_tile * itemsize
    out_block = s_tile * d_tile * itemsize
    acc_bytes = s_tile * d_tile * 4 if use_scratch else 0
    resident = 2 * in_block + 2 * out_block + acc_bytes
    vmem_limit = max(32 << 20, resident + (8 << 20))
    vmem_limit = min(vmem_limit, max(vmem_cap - (4 << 20), resident + (2 << 20)))

    return pl.pallas_call(
        _make_mean_kernel(T, use_scratch),
        out_shape=jax.ShapeDtypeStruct((S, D), x.dtype),
        grid_spec=pltpu.PrefetchScalarGridSpec(
            num_scalar_prefetch=0,
            grid=grid,
            in_specs=[
                pl.BlockSpec((s_tile, t_tile, d_tile), lambda i, j, k: (i, k, j)),
            ],
            out_specs=pl.BlockSpec((s_tile, d_tile), lambda i, j, k: (i, j)),
            scratch_shapes=scratch,
        ),
        compiler_params=pltpu.CompilerParams(
            dimension_semantics=("parallel", "parallel", "arbitrary"),
            vmem_limit_bytes=int(vmem_limit),
        ),
        cost_estimate=pl.CostEstimate(
            flops=S * T * D,
            transcendentals=0,
            bytes_accessed=S * T * D * itemsize + S * D * itemsize,
        ),
    )(x)


def encoder_average_head(x):
    """x: (S, T, D) -> (S, T, D), matching EncoderAverageHead.forward."""
    S, T, D = x.shape
    sent_means = _sentence_means(x)
    # Exact analogue of `sent_means.repeat(T, 1, 1).reshape(S, T, D)`: the tiled
    # (T, S, D) array is already flat-row identical to the result, so the
    # reshape is metadata-only and this lowers to one broadcast copy.
    return jnp.tile(sent_means, (T, 1, 1)).reshape(S, T, D)


def _reference(x):
    S, T, D = x.shape
    means = jnp.mean(x.astype(jnp.float32), axis=1).astype(x.dtype)
    return jnp.tile(means, (T, 1, 1)).reshape(S, T, D)


if __name__ == "__main__":
    key = jax.random.PRNGKey(0)

    # Small shape consistent with the module: (n_sents, n_tokens, n_dims).
    S, T, D = 2, 8, 32
    x = jax.random.normal(key, (S, T, D), dtype=jnp.float32)
    out = jax.block_until_ready(encoder_average_head(x))
    np.testing.assert_allclose(np.asarray(out), np.asarray(_reference(x)),
                               rtol=1e-5, atol=1e-5)
    assert out.shape == (S, T, D) and out.dtype == x.dtype

    # Multi-step grid along both the parallel S axis and the T reduction axis
    # (exercises the f32 accumulate-into-output path + megacore S split).
    S2, T2, D2 = 16, 64, 128
    x2 = jax.random.normal(jax.random.PRNGKey(0), (S2, T2, D2), dtype=jnp.float32)
    out2 = jax.block_until_ready(encoder_average_head(x2))
    np.testing.assert_allclose(np.asarray(out2), np.asarray(_reference(x2)),
                               rtol=1e-5, atol=1e-5)
    assert out2.shape == (S2, T2, D2) and out2.dtype == x2.dtype

    # bf16 path (packed sublane multiple of 16 + f32 scratch accumulator).
    S3, T3, D3 = 4, 16, 256
    x3 = jax.random.normal(jax.random.PRNGKey(0), (S3, T3, D3), dtype=jnp.bfloat16)
    out3 = jax.block_until_ready(encoder_average_head(x3))
    np.testing.assert_allclose(np.asarray(out3, dtype=np.float32),
                               np.asarray(_reference(x3), dtype=np.float32),
                               rtol=2e-2, atol=2e-2)
    assert out3.shape == (S3, T3, D3) and out3.dtype == x3.dtype

    print("KERNEL_OK")
</pallas_src>

<mosaic_0001>
module attributes {stable_mosaic.version = 11 : i64} {
  func.func @kernel(%arg0: i32, %arg1: i32, %arg2: i32, %arg3: memref<2x8x32xf32, #tpu.memory_space<vmem>>, %arg4: memref<2x32xf32, #tpu.memory_space<vmem>>) attributes {dimension_semantics = [#tpu.dimension_semantics<parallel>, #tpu.dimension_semantics<parallel>, #tpu.dimension_semantics<arbitrary>], iteration_bounds = array<i64: 1, 1, 1>, scalar_prefetch = 0 : i64, scratch_operands = 0 : i64, tpu.core_type = #tpu.core_type<tc>, window_params = [{transform_indices = @transform_0, window_bounds = array<i64: 2, 8, 32>}, {transform_indices = @transform_1, window_bounds = array<i64: 2, 32>}]} {
    %c0_i32 = arith.constant 0 : i32
    %0 = arith.cmpi eq, %arg2, %c0_i32 : i32
    %1 = arith.extui %0 : i1 to i32
    %c0_i32_0 = arith.constant 0 : i32
    %2 = arith.cmpi ne, %1, %c0_i32_0 : i32
    scf.if %2 {
      %cst_9 = arith.constant 0.000000e+00 : f32
      %11 = vector.broadcast %cst_9 : f32 to vector<2x32xf32>
      %c0_10 = arith.constant 0 : index
      %c0_11 = arith.constant 0 : index
      %12 = vector.load %arg4[%c0_10, %c0_11] : memref<2x32xf32, #tpu.memory_space<vmem>>, vector<2x32xf32>
      tpu.vector_store %arg4[%c0_10, %c0_11], %11 {strides = array<i32>} : memref<2x32xf32, #tpu.memory_space<vmem>>, vector<2x32xf32>,
    } else {
    }
    %c0 = arith.constant 0 : index
    %c0_1 = arith.constant 0 : index
    %3 = vector.load %arg4[%c0, %c0_1] : memref<2x32xf32, #tpu.memory_space<vmem>>, vector<2x32xf32>
    %c0_2 = arith.constant 0 : index
    %c0_3 = arith.constant 0 : index
    %c0_4 = arith.constant 0 : index
    %4 = vector.load %arg3[%c0_2, %c0_3, %c0_4] : memref<2x8x32xf32, #tpu.memory_space<vmem>>, vector<2x8x32xf32>
    %cst = arith.constant dense<0.000000e+00> : vector<2x32xf32>
    %5 = vector.multi_reduction <add>, %4, %cst [1] : vector<2x8x32xf32> to vector<2x32xf32>
    %6 = arith.addf %3, %5 : vector<2x32xf32>
    %c0_5 = arith.constant 0 : index
    %c0_6 = arith.constant 0 : index
    %7 = vector.load %arg4[%c0_5, %c0_6] : memref<2x32xf32, #tpu.memory_space<vmem>>, vector<2x32xf32>
    tpu.vector_store %arg4[%c0_5, %c0_6], %6 {strides = array<i32>} : memref<2x32xf32, #tpu.memory_space<vmem>>, vector<2x32xf32>,
    %c0_i32_7 = arith.constant 0 : i32
    %8 = arith.cmpi eq, %arg2, %c0_i32_7 : i32
    %9 = arith.extui %8 : i1 to i32
    %c0_i32_8 = arith.constant 0 : i32
    %10 = arith.cmpi ne, %9, %c0_i32_8 : i32
    scf.if %10 {
      %c0_9 = arith.constant 0 : index
      %c0_10 = arith.constant 0 : index
      %11 = vector.load %arg4[%c0_9, %c0_10] : memref<2x32xf32, #tpu.memory_space<vmem>>, vector<2x32xf32>
      %cst_11 = arith.constant 1.250000e-01 : f32
      %12 = vector.broadcast %cst_11 : f32 to vector<2x32xf32>
      %13 = arith.mulf %11, %12 : vector<2x32xf32>
      %c0_12 = arith.constant 0 : index
      %c0_13 = arith.constant 0 : index
      %14 = vector.load %arg4[%c0_12, %c0_13] : memref<2x32xf32, #tpu.memory_space<vmem>>, vector<2x32xf32>
      tpu.vector_store %arg4[%c0_12, %c0_13], %13 {strides = array<i32>} : memref<2x32xf32, #tpu.memory_space<vmem>>, vector<2x32xf32>,
    } else {
    }
    return
  }
  func.func @transform_0(%arg0: i32, %arg1: i32, %arg2: i32) -> (i32, i32, i32) {
    %c0_i32 = arith.constant 0 : i32
    return %arg0, %arg2, %arg1 : i32, i32, i32
  }
  func.func @transform_1(%arg0: i32, %arg1: i32, %arg2: i32) -> (i32, i32) {
    %c0_i32 = arith.constant 0 : i32
    return %arg0, %arg1 : i32, i32
  }
}

</mosaic_0001>

<llo_original>
// kernel: tpu_custom_call.1
$region0: #{tpu_custom_call.1}
  #allocation0 [shape = 'u32[]', space=smem, size = 0x4, offset = 0x4, fixed_abs, tag = 'smem constant byte address 0x4 - core index']
  #allocation1 [shape = 'u32[144,128]{1,0:T(1,128)}', space=vmem, size = 0x12000, scoped, tag = 'internal scratch']
  %s0 = inlined_call_operand.hbm [shape: f32[2,8,32], index: 0, kind: input, shape index: {}]
  %s1 = inlined_call_operand.hbm [shape: f32[2,32], index: 1, kind: output, shape index: {}]
  %s2 = sld [smem:[#allocation0]]
  $region26: #{tpu_custom_call.1} parent=0
    _
  %s4 = ssub.s32 1, %s2
  %s5 = scalar_select 0, %s4, %s2
  $region1: #{tpu_custom_call.1} parent=0
    #allocation2 [shape = 'u8[8192]{0}', space=vmem, size = 0x2000, scoped, tag = 'input window, operand 0, single buffered']
    #allocation3 [shape = 's32[1]{0}', space=sflag, size = 0x4, scoped, tag = 'scoped memory for tpu_custom_call.1']
    #allocation4 [shape = 's32[1]{0}', space=sflag, size = 0x4, scoped, tag = 'scoped memory for tpu_custom_call.1']
    #allocation5 [shape = 'u8[1024]{0}', space=vmem, size = 0x400, scoped, tag = 'output window, operand 0, single buffered']
    %6 = vsyncpa [#allocation3], 0
    %7 = vsyncpa [#allocation4], 0
    // Predicated region
    $region2: #{tpu_custom_call.1} parent=1 // pred_check
      _
    $region3: #{tpu_custom_call.1} parent=1 // pred_check_branch
      %9 = sbr.rel (0) target = $region5
    $region4: #{tpu_custom_call.1} parent=1 // pred_region
      %s11 = ssub.s32 256, 256
      %12 = vsyncadd [#allocation3], %s11
      %s13 = sshll.u32 [#allocation2], 4
      %s14 = int_to_ptr.vmem [resolvable:$true] %s13
      %19 = dma.hbm_to_vmem [thread:$0]  %s0, 256, %s14, [#allocation3], 128, 128, 8
    $region5: #{tpu_custom_call.1} parent=1 // pred_fallthru
      _
    // Predicated region
    $region6: #{tpu_custom_call.1} parent=1 // pred_check
      _
    $region7: #{tpu_custom_call.1} parent=1 // pred_check_branch
      %21 = sbr.rel (0) target = $region9
    $region8: #{tpu_custom_call.1} parent=1 // pred_region
      %22 = dma.done [#allocation3], 256
    $region9: #{tpu_custom_call.1} parent=1 // pred_fallthru
      _
    %p23 = scmp.eq.s32.totalorder 0, 0
    // Predicated region
    $region10: #{tpu_custom_call.1} parent=1 // pred_check
      %p24 = pneg %p23
    $region11: #{tpu_custom_call.1} parent=1 // pred_check_branch
      %26 = sbr.rel (%p24) target = $region13
    $region12: #{tpu_custom_call.1} parent=1 // pred_region
      %vm27 = vcmask 254976
      %28 = vst.msk [vmem:[#allocation5] sm:$0x3] %vm27, 0.0
    $region13: #{tpu_custom_call.1} parent=1 // pred_fallthru
      _
    %v29 = vld [vmem:[#allocation5] sm:$0x3]
    %v30 = vld [vmem:[#allocation2] sm:$0xff]
    %v31 = vld [vmem:[#allocation2 + $0x8] sm:$0xff]
    %vm32 = vcmask 261120
    %v33 = vsel %vm32, %v30, 0.0
    %v34 = vrot.slane %v33, 4
    %v35 = vadd.f32 %v33, %v34
    %v36 = vrot.slane %v35, 2
    %v37 = vadd.f32 %v35, %v36
    %v38 = vrot.slane %v37, 1
    %v39 = vadd.f32 %v37, %v38
    %v40 = vsel %vm32, %v31, 0.0
    %v41 = vrot.slane %v40, 4
    %v42 = vadd.f32 %v40, %v41
    %v43 = vrot.slane %v42, 2
    %v44 = vadd.f32 %v42, %v43
    %v45 = vrot.slane %v44, 1
    %v46 = vadd.f32 %v44, %v45
    %vm49 = vcmask 1041409
    %v50 = vsel %vm49, %v46, %v39
    %v52 = vadd.f32 %v29, %v50
    %vm53 = vcmask 254976
    %54 = vst.msk [vmem:[#allocation5] sm:$0x3] %vm53, %v52
    // Predicated region
    $region14: #{tpu_custom_call.1} parent=1 // pred_check
      %p55 = pneg %p23
    $region15: #{tpu_custom_call.1} parent=1 // pred_check_branch
      %57 = sbr.rel (%p55) target = $region17
    $region16: #{tpu_custom_call.1} parent=1 // pred_region
      %v58 = vld [vmem:[#allocation5] sm:$0x3]
      %v59 = vmul.f32 %v58, 0.125
      %60 = vst.msk [vmem:[#allocation5] sm:$0x3] %vm53, %v59
    $region17: #{tpu_custom_call.1} parent=1 // pred_fallthru
      _
    // Predicated region
    $region18: #{tpu_custom_call.1} parent=1 // pred_check
      _
    $region19: #{tpu_custom_call.1} parent=1 // pred_check_branch
      %62 = sbr.rel (0) target = $region21
    $region20: #{tpu_custom_call.1} parent=1 // pred_region
      %s64 = ssub.s32 32, 32
      %65 = vsyncadd [#allocation4], %s64
      %s67 = sshll.u32 [#allocation5], 4
      %s68 = int_to_ptr.vmem [resolvable:$true] %s67
      %70 = dma.vmem_to_hbm [thread:$0]  %s68, 32, %s1, [#allocation4]
    $region21: #{tpu_custom_call.1} parent=1 // pred_fallthru
      _
    // Predicated region
    $region22: #{tpu_custom_call.1} parent=1 // pred_check
      _
    $region23: #{tpu_custom_call.1} parent=1 // pred_check_branch
      %72 = sbr.rel (0) target = $region25
    $region24: #{tpu_custom_call.1} parent=1 // pred_region
      %73 = dma.done [#allocation4], 32
    $region25: #{tpu_custom_call.1} parent=1 // pred_fallthru
      _
    %74 = vsyncpa [#allocation3], 1
    %75 = vsyncpa [#allocation4], 1

</llo_original>
